<compile_context>
chip_gen: v5e
topology: v5e:2x2
jax: 0.10.0
libtpu: 0.0.40
codegen_flags: <defaults>
</compile_context>

<pallas_src>
import jax
import jax.numpy as jnp
from jax.experimental import pallas as pl
from jax.experimental.pallas import tpu as pltpu


def _round_up(x, m):
    return ((x + m - 1) // m) * m


def _sublane(dt):
    # Sublane packing granularity: (8,128) tiles for 4-byte, (16,128) for 2-byte.
    return 16 if jnp.dtype(dt).itemsize == 2 else 8


def _detect_num_tensorcores():
    """Best-effort TensorCores per device (2 on v7x, 1 on v5e/v6e).
    Purely a tiling heuristic; correctness never depends on it."""
    try:
        d = jax.devices()[0]
        n = int(getattr(d, "num_cores", 1) or 1)
    except Exception:
        n = 1
    return max(1, min(n, 2))


def autoencoder_kernel(x_ref, we_ref, be_ref, wd_ref, bd_ref, o_ref):
    # Cast to the compute dtype *in-kernel* (avoids a wrapper-side astype HBM pass).
    x = x_ref[...].astype(we_ref.dtype)
    # encoder: x @ W_enc^T + b_enc   (W_enc^T supplied as we_ref [D, h_pad])
    enc = jnp.dot(x, we_ref[...], preferred_element_type=jnp.float32)
    enc = enc + be_ref[...].astype(jnp.float32)
    # sigmoid in f32: exp and the approximate reciprocal both run on the EUP
    # slot, overlapping with MXU/VPU work instead of a VPU Newton divide.
    enc = pl.reciprocal(1.0 + jnp.exp(-enc), approx=True)
    # decoder: enc @ W_dec^T + b_dec (W_dec^T supplied as wd_ref [h_pad, D])
    out = jnp.dot(enc.astype(wd_ref.dtype), wd_ref[...],
                  preferred_element_type=jnp.float32)
    out = out + bd_ref[...].astype(jnp.float32)
    o_ref[...] = out.astype(o_ref.dtype)


def prepare_params(enc_w, enc_b, dec_w, dec_b, *, compute_dtype=None):
    """One-time parameter prep (call once, NOT per forward):
      - transpose weights to [D, h_pad] / [h_pad, D] for row-major MXU matmuls
      - zero-pad the hidden dim h to a lane-friendly multiple of 128
      - optionally cast to a narrower compute dtype (bf16 pays off on every
        generation — most on v5e, which has the lowest HBM bandwidth; the
        kernel keeps accumulation / bias / sigmoid in f32).

    enc_w: [h, D], enc_b: [h], dec_w: [D, h], dec_b: [D]
    Padding is exact: padded decoder-weight rows are zero, so the 0.5 that
    sigmoid produces on padded hidden units contributes nothing to the output.
    NOTE: hidden is padded only to 128 (not 256 for the v6e/v7x MXU): padding
    further doubles FLOPs/weight bytes for zero output; a large batch tile (M)
    amortizes the 128-wide pushes instead.
    """
    h, D = enc_w.shape
    hp = _round_up(h, 128)
    dt = compute_dtype if compute_dtype is not None else enc_w.dtype

    we_t = jnp.zeros((D, hp), dt).at[:, :h].set(enc_w.T.astype(dt))   # [D, hp]
    wd_t = jnp.zeros((hp, D), dt).at[:h, :].set(dec_w.T.astype(dt))   # [hp, D]
    be = jnp.zeros((1, hp), dt).at[:, :h].set(enc_b.astype(dt))       # [1, hp]
    bd = dec_b.reshape(1, D).astype(dt)                               # [1, D]
    return we_t, be, wd_t, bd


def autoencoder_forward(x, we_t, be, wd_t, bd, *, tile_b=1024, out_dtype=None,
                        num_cores=None):
    """x: [B, D] with any B (any dtype; cast to the weight dtype in-kernel).
    Params must come from prepare_params(). out_dtype defaults to x.dtype;
    pass jnp.bfloat16 to halve output writeback when the consumer tolerates it."""
    B, D = x.shape
    hp = we_t.shape[1]
    out_dtype = x.dtype if out_dtype is None else jnp.dtype(out_dtype)
    if num_cores is None:
        num_cores = _detect_num_tensorcores()

    sub = max(_sublane(x.dtype), _sublane(out_dtype))

    if num_cores > 1 and B > 2 * num_cores * sub:
        # v7x: >= 2 grid steps per TensorCore so each core overlaps its input
        # prefetch / output writeback with compute (and the cores stay balanced).
        tb = min(tile_b, _round_up(pl.cdiv(B, 2 * num_cores), sub))
    else:
        # Single-TC chips (v5e/v6e): the grid is a serial loop, so use one big
        # tile when B fits (capped by tile_b for VMEM / roofline: 512-1024 rows
        # reaches ~85% of HBM roofline vs ~63% at 256).
        tb = min(tile_b, _round_up(B, sub))
    tb = max(tb, sub)
    grid = (pl.cdiv(B, tb),)
    # No batch padding / result slicing: Pallas clips the last partial block.
    # Rows are independent, so garbage in the OOB part of the last *read* block
    # is harmless and its OOB *writes* are dropped.

    compute_itemsize = jnp.dtype(we_t.dtype).itemsize
    cost = pl.CostEstimate(
        flops=4 * B * D * hp,                               # two matmuls
        transcendentals=B * hp,                             # sigmoid
        bytes_accessed=(B * D * jnp.dtype(x.dtype).itemsize
                        + (2 * D * hp + hp + D) * compute_itemsize
                        + B * D * jnp.dtype(out_dtype).itemsize),
    )

    # Weights/biases stay VMEM-resident across the whole grid (constant
    # index_maps). Total VMEM at tb=1024, D=hp=128, f32 is ~2.3 MiB — far under
    # the scoped limit on every generation (incl. v7x's 64 MiB physical).
    # TODO(synk): if D*hp ever grows toward the scoped-VMEM limit, mark the
    # constant-index parameter specs pipeline_mode=pl.Buffered(1) (no double
    # buffer needed) or switch them to memory_space=pl.ANY + one manual DMA.
    return pl.pallas_call(
        autoencoder_kernel,
        out_shape=jax.ShapeDtypeStruct((B, D), out_dtype),
        grid_spec=pltpu.PrefetchScalarGridSpec(
            num_scalar_prefetch=0,
            grid=grid,
            in_specs=[
                pl.BlockSpec((tb, D), lambda i: (i, 0)),    # x batch tile
                pl.BlockSpec((D, hp), lambda i: (0, 0)),    # enc W^T (resident)
                pl.BlockSpec((1, hp), lambda i: (0, 0)),    # enc bias
                pl.BlockSpec((hp, D), lambda i: (0, 0)),    # dec W^T (resident)
                pl.BlockSpec((1, D), lambda i: (0, 0)),     # dec bias
            ],
            out_specs=pl.BlockSpec((tb, D), lambda i: (i, 0)),
        ),
        compiler_params=pltpu.CompilerParams(
            dimension_semantics=("parallel",)),
        cost_estimate=cost,
    )(x, we_t, be, wd_t, bd)


if __name__ == "__main__":
    # Module-consistent shapes: input_shape (D) = 128, h = 50, batch = 8.
    B, D, H = 8, 128, 50
    key = jax.random.PRNGKey(0)
    kx, ke, keb, kd, kdb = jax.random.split(key, 5)

    x = jax.random.normal(kx, (B, D), dtype=jnp.float32)
    # Deterministic synthetic parameters (stand-ins for enc_weights/dec_weights).
    enc_w = jax.random.normal(ke, (H, D), dtype=jnp.float32) * 0.05   # [h, D]
    enc_b = jax.random.normal(keb, (H,), dtype=jnp.float32) * 0.05    # [h]
    dec_w = jax.random.normal(kd, (D, H), dtype=jnp.float32) * 0.05   # [D, h]
    dec_b = jax.random.normal(kdb, (D,), dtype=jnp.float32) * 0.05    # [D]

    # One-time param prep (transpose + h-padding to 128).
    params_f32 = prepare_params(enc_w, enc_b, dec_w, dec_b)

    def ref_fn(xi):
        return jax.nn.sigmoid(xi @ enc_w.T + enc_b) @ dec_w.T + dec_b

    # Tolerance accounts for the EUP approx-reciprocal inside the sigmoid
    # (actual error is orders of magnitude smaller); real bugs show as O(0.1).
    tol = dict(atol=5e-3, rtol=5e-3)

    # Small batch (single tile).
    out = jax.block_until_ready(autoencoder_forward(x, *params_f32))
    assert out.shape == (B, D) and out.dtype == x.dtype
    assert jnp.allclose(out, ref_fn(x), **tol)

    # Non-multiple batch: exercises the clipped partial edge block (no pad/slice).
    B2 = 300
    x2 = jax.random.normal(jax.random.PRNGKey(1), (B2, D), dtype=jnp.float32)
    out2 = jax.block_until_ready(autoencoder_forward(x2, *params_f32))
    assert out2.shape == (B2, D)
    assert jnp.allclose(out2, ref_fn(x2), **tol)

    # Low-HBM-traffic option (all generations): bf16 weights/compute and bf16
    # output; accumulation, bias add and sigmoid stay in f32 inside the kernel.
    params_bf16 = prepare_params(enc_w, enc_b, dec_w, dec_b,
                                 compute_dtype=jnp.bfloat16)
    out3 = jax.block_until_ready(
        autoencoder_forward(x2, *params_bf16, out_dtype=jnp.bfloat16))
    assert out3.shape == (B2, D) and out3.dtype == jnp.bfloat16
    assert jnp.allclose(out3.astype(jnp.float32), ref_fn(x2),
                        atol=3e-2, rtol=3e-2)

    print("KERNEL_OK")
</pallas_src>

<mosaic_0001>
module attributes {stable_mosaic.version = 11 : i64} {
  func.func @autoencoder_kernel(%arg0: i32, %arg1: memref<8x128xf32, #tpu.memory_space<vmem>>, %arg2: memref<128x128xf32, #tpu.memory_space<vmem>>, %arg3: memref<1x128xf32, #tpu.memory_space<vmem>>, %arg4: memref<128x128xf32, #tpu.memory_space<vmem>>, %arg5: memref<1x128xf32, #tpu.memory_space<vmem>>, %arg6: memref<8x128xf32, #tpu.memory_space<vmem>>) attributes {dimension_semantics = [#tpu.dimension_semantics<parallel>], iteration_bounds = array<i64: 1>, scalar_prefetch = 0 : i64, scratch_operands = 0 : i64, tpu.core_type = #tpu.core_type<tc>, window_params = [{transform_indices = @transform_0, window_bounds = array<i64: 8, 128>}, {pipeline_mode = #tpu.pipeline_mode<synchronous>, transform_indices = @transform_1, window_bounds = array<i64: 128, 128>}, {pipeline_mode = #tpu.pipeline_mode<synchronous>, transform_indices = @transform_2, window_bounds = array<i64: 1, 128>}, {pipeline_mode = #tpu.pipeline_mode<synchronous>, transform_indices = @transform_3, window_bounds = array<i64: 128, 128>}, {pipeline_mode = #tpu.pipeline_mode<synchronous>, transform_indices = @transform_4, window_bounds = array<i64: 1, 128>}, {transform_indices = @transform_5, window_bounds = array<i64: 8, 128>}]} {
    %c0 = arith.constant 0 : index
    %c0_0 = arith.constant 0 : index
    %0 = vector.load %arg1[%c0, %c0_0] : memref<8x128xf32, #tpu.memory_space<vmem>>, vector<8x128xf32>
    %c0_1 = arith.constant 0 : index
    %c0_2 = arith.constant 0 : index
    %1 = vector.load %arg2[%c0_1, %c0_2] : memref<128x128xf32, #tpu.memory_space<vmem>>, vector<128x128xf32>
    %cst = arith.constant dense<0.000000e+00> : vector<8x128xf32>
    %2 = tpu.matmul %0, %1, %cst {dimension_numbers = #tpu.dot_dimension_numbers<[1], [0], [0], [1], [0, 0, 1, 1], [], []>} : vector<8x128xf32>, vector<128x128xf32>, vector<8x128xf32> -> vector<8x128xf32>
    %c0_3 = arith.constant 0 : index
    %c0_4 = arith.constant 0 : index
    %3 = vector.load %arg3[%c0_3, %c0_4] : memref<1x128xf32, #tpu.memory_space<vmem>>, vector<1x128xf32>
    %4 = vector.broadcast %3 : vector<1x128xf32> to vector<8x128xf32>
    %5 = arith.addf %2, %4 : vector<8x128xf32>
    %cst_5 = arith.constant 0.000000e+00 : f32
    %6 = vector.broadcast %cst_5 : f32 to vector<8x128xf32>
    %7 = arith.subf %6, %5 : vector<8x128xf32>
    %8 = math.exp %7 : vector<8x128xf32>
    %cst_6 = arith.constant 1.000000e+00 : f32
    %9 = vector.broadcast %cst_6 : f32 to vector<8x128xf32>
    %10 = arith.addf %9, %8 : vector<8x128xf32>
    %11 = tpu.reciprocal %10 {approx = true} : vector<8x128xf32> -> vector<8x128xf32>
    %c0_7 = arith.constant 0 : index
    %c0_8 = arith.constant 0 : index
    %12 = vector.load %arg4[%c0_7, %c0_8] : memref<128x128xf32, #tpu.memory_space<vmem>>, vector<128x128xf32>
    %cst_9 = arith.constant dense<0.000000e+00> : vector<8x128xf32>
    %13 = tpu.matmul %11, %12, %cst_9 {dimension_numbers = #tpu.dot_dimension_numbers<[1], [0], [0], [1], [0, 0, 1, 1], [], []>} : vector<8x128xf32>, vector<128x128xf32>, vector<8x128xf32> -> vector<8x128xf32>
    %c0_10 = arith.constant 0 : index
    %c0_11 = arith.constant 0 : index
    %14 = vector.load %arg5[%c0_10, %c0_11] : memref<1x128xf32, #tpu.memory_space<vmem>>, vector<1x128xf32>
    %15 = vector.broadcast %14 : vector<1x128xf32> to vector<8x128xf32>
    %16 = arith.addf %13, %15 : vector<8x128xf32>
    %c0_12 = arith.constant 0 : index
    %c0_13 = arith.constant 0 : index
    %17 = vector.load %arg6[%c0_12, %c0_13] : memref<8x128xf32, #tpu.memory_space<vmem>>, vector<8x128xf32>
    tpu.vector_store %arg6[%c0_12, %c0_13], %16 {strides = array<i32>} : memref<8x128xf32, #tpu.memory_space<vmem>>, vector<8x128xf32>,
    return
  }
  func.func @transform_0(%arg0: i32) -> (i32, i32) {
    %c0_i32 = arith.constant 0 : i32
    %c0_i32_0 = arith.constant 0 : i32
    return %arg0, %c0_i32 : i32, i32
  }
  func.func @transform_1(%arg0: i32) -> (i32, i32) {
    %c0_i32 = arith.constant 0 : i32
    %c0_i32_0 = arith.constant 0 : i32
    %c0_i32_1 = arith.constant 0 : i32
    return %c0_i32, %c0_i32_0 : i32, i32
  }
  func.func @transform_2(%arg0: i32) -> (i32, i32) {
    %c0_i32 = arith.constant 0 : i32
    %c0_i32_0 = arith.constant 0 : i32
    %c0_i32_1 = arith.constant 0 : i32
    return %c0_i32, %c0_i32_0 : i32, i32
  }
  func.func @transform_3(%arg0: i32) -> (i32, i32) {
    %c0_i32 = arith.constant 0 : i32
    %c0_i32_0 = arith.constant 0 : i32
    %c0_i32_1 = arith.constant 0 : i32
    return %c0_i32, %c0_i32_0 : i32, i32
  }
  func.func @transform_4(%arg0: i32) -> (i32, i32) {
    %c0_i32 = arith.constant 0 : i32
    %c0_i32_0 = arith.constant 0 : i32
    %c0_i32_1 = arith.constant 0 : i32
    return %c0_i32, %c0_i32_0 : i32, i32
  }
  func.func @transform_5(%arg0: i32) -> (i32, i32) {
    %c0_i32 = arith.constant 0 : i32
    %c0_i32_0 = arith.constant 0 : i32
    return %arg0, %c0_i32 : i32, i32
  }
}

</mosaic_0001>

<llo_original>
// kernel: tpu_custom_call.1
$region0: #{tpu_custom_call.1}
  #allocation0 [shape = 'u32[]', space=smem, size = 0x4, offset = 0x4, fixed_abs, tag = 'smem constant byte address 0x4 - core index']
  #allocation1 [shape = 'u32[72,128]{1,0:T(1,128)}', space=vmem, size = 0x9000, scoped, tag = 'internal scratch']
  %s0 = inlined_call_operand.hbm [shape: f32[8,128], index: 0, kind: input, shape index: {}]
  %s1 = inlined_call_operand.hbm [shape: f32[128,128], index: 1, kind: input, shape index: {}]
  %s2 = inlined_call_operand.vmem [shape: f32[1,128], index: 2, kind: input, shape index: {}]
  %s3 = inlined_call_operand.hbm [shape: f32[128,128], index: 3, kind: input, shape index: {}]
  %s4 = inlined_call_operand.vmem [shape: f32[1,128], index: 4, kind: input, shape index: {}]
  %s5 = inlined_call_operand.hbm [shape: f32[8,128], index: 5, kind: output, shape index: {}]
  %s6 = sld [smem:[#allocation0]]
  $region42: #{tpu_custom_call.1} parent=0
    _
  %s8 = ssub.s32 1, %s6
  %s9 = scalar_select 0, %s8, %s6
  $region1: #{tpu_custom_call.1} parent=0
    #allocation2 [shape = 'u8[4096]{0}', space=vmem, size = 0x1000, scoped, tag = 'input window, operand 0, single buffered']
    #allocation3 [shape = 's32[1]{0}', space=sflag, size = 0x4, scoped, tag = 'scoped memory for tpu_custom_call.1']
    #allocation4 [shape = 's32[1]{0}', space=sflag, size = 0x4, scoped, tag = 'scoped memory for tpu_custom_call.1']
    #allocation5 [shape = 'u8[65536]{0}', space=vmem, size = 0x10000, scoped, tag = 'input window, operand 1, single buffered']
    #allocation6 [shape = 's32[1]{0}', space=sflag, size = 0x4, scoped, tag = 'scoped memory for tpu_custom_call.1']
    #allocation7 [shape = 'u8[65536]{0}', space=vmem, size = 0x10000, scoped, tag = 'input window, operand 3, single buffered']
    #allocation8 [shape = 'u8[4096]{0}', space=vmem, size = 0x1000, scoped, tag = 'output window, operand 0, single buffered']
    %10 = vsyncpa [#allocation3], 0
    %11 = vsyncpa [#allocation6], 0
    %12 = vsyncpa [#allocation4], 0
    // Predicated region
    $region2: #{tpu_custom_call.1} parent=1 // pred_check
      _
    $region3: #{tpu_custom_call.1} parent=1 // pred_check_branch
      %14 = sbr.rel (0) target = $region5
    $region4: #{tpu_custom_call.1} parent=1 // pred_region
      %16 = vsyncadd [#allocation3], 0
      %s18 = sshll.u32 %s0, 4
      %s19 = int_to_ptr.hbm [resolvable:$true] %s18
      %s20 = sshll.u32 [#allocation2], 4
      %s21 = int_to_ptr.vmem [resolvable:$true] %s20
      %23 = dma.hbm_to_vmem [thread:$0]  %s19, 128, %s21, [#allocation3]
    $region5: #{tpu_custom_call.1} parent=1 // pred_fallthru
      _
    // Predicated region
    $region6: #{tpu_custom_call.1} parent=1 // pred_check
      _
    $region7: #{tpu_custom_call.1} parent=1 // pred_check_branch
      %25 = sbr.rel (0) target = $region9
    $region8: #{tpu_custom_call.1} parent=1 // pred_region
      %27 = vsyncadd [#allocation6], 0
      %s28 = sshll.u32 %s1, 4
      %s29 = int_to_ptr.hbm [resolvable:$true] %s28
      %s30 = sshll.u32 [#allocation5], 4
      %s31 = int_to_ptr.vmem [resolvable:$true] %s30
      %36 = dma.hbm_to_vmem [thread:$0]  %s29, 2048, %s31, [#allocation6], 128, 128, 8
    $region9: #{tpu_custom_call.1} parent=1 // pred_fallthru
      _
    // Predicated region
    $region10: #{tpu_custom_call.1} parent=1 // pred_check
      _
    $region11: #{tpu_custom_call.1} parent=1 // pred_check_branch
      %38 = sbr.rel (0) target = $region13
    $region12: #{tpu_custom_call.1} parent=1 // pred_region
      _
    $region13: #{tpu_custom_call.1} parent=1 // pred_fallthru
      _
    // Predicated region
    $region14: #{tpu_custom_call.1} parent=1 // pred_check
      _
    $region15: #{tpu_custom_call.1} parent=1 // pred_check_branch
      %40 = sbr.rel (0) target = $region17
    $region16: #{tpu_custom_call.1} parent=1 // pred_region
      %42 = vsyncadd [#allocation6], 0
      %s43 = sshll.u32 %s3, 4
      %s44 = int_to_ptr.hbm [resolvable:$true] %s43
      %s45 = sshll.u32 [#allocation7], 4
      %s46 = int_to_ptr.vmem [resolvable:$true] %s45
      %51 = dma.hbm_to_vmem [thread:$0]  %s44, 2048, %s46, [#allocation6], 128, 128, 8
    $region17: #{tpu_custom_call.1} parent=1 // pred_fallthru
      _
    // Predicated region
    $region18: #{tpu_custom_call.1} parent=1 // pred_check
      _
    $region19: #{tpu_custom_call.1} parent=1 // pred_check_branch
      %53 = sbr.rel (0) target = $region21
    $region20: #{tpu_custom_call.1} parent=1 // pred_region
      _
    $region21: #{tpu_custom_call.1} parent=1 // pred_fallthru
      _
    // Predicated region
    $region22: #{tpu_custom_call.1} parent=1 // pred_check
      _
    $region23: #{tpu_custom_call.1} parent=1 // pred_check_branch
      %55 = sbr.rel (0) target = $region25
    $region24: #{tpu_custom_call.1} parent=1 // pred_region
      %57 = dma.done [#allocation3], 128
    $region25: #{tpu_custom_call.1} parent=1 // pred_fallthru
      _
    // Predicated region
    $region26: #{tpu_custom_call.1} parent=1 // pred_check
      _
    $region27: #{tpu_custom_call.1} parent=1 // pred_check_branch
      %59 = sbr.rel (0) target = $region29
    $region28: #{tpu_custom_call.1} parent=1 // pred_region
      %61 = dma.done [#allocation6], 2048
    $region29: #{tpu_custom_call.1} parent=1 // pred_fallthru
      _
    // Predicated region
    $region30: #{tpu_custom_call.1} parent=1 // pred_check
      _
    $region31: #{tpu_custom_call.1} parent=1 // pred_check_branch
      %63 = sbr.rel (0) target = $region33
    $region32: #{tpu_custom_call.1} parent=1 // pred_region
      %65 = dma.done [#allocation6], 2048
    $region33: #{tpu_custom_call.1} parent=1 // pred_fallthru
      _
    %v66 = vld [vmem:[#allocation2] sm:$0xff]
    %v67 = vld [vmem:[#allocation5] sm:$0xff]
    %v68 = vld [vmem:[#allocation5 + $0x8] sm:$0xff]
    %v69 = vld [vmem:[#allocation5 + $0x10] sm:$0xff]
    %v70 = vld [vmem:[#allocation5 + $0x18] sm:$0xff]
    %v71 = vld [vmem:[#allocation5 + $0x20] sm:$0xff]
    %v72 = vld [vmem:[#allocation5 + $0x28] sm:$0xff]
    %v73 = vld [vmem:[#allocation5 + $0x30] sm:$0xff]
    %v74 = vld [vmem:[#allocation5 + $0x38] sm:$0xff]
    %v75 = vld [vmem:[#allocation5 + $0x40] sm:$0xff]
    %v76 = vld [vmem:[#allocation5 + $0x48] sm:$0xff]
    %v77 = vld [vmem:[#allocation5 + $0x50] sm:$0xff]
    %v78 = vld [vmem:[#allocation5 + $0x58] sm:$0xff]
    %v79 = vld [vmem:[#allocation5 + $0x60] sm:$0xff]
    %v80 = vld [vmem:[#allocation5 + $0x68] sm:$0xff]
    %v81 = vld [vmem:[#allocation5 + $0x70] sm:$0xff]
    %v82 = vld [vmem:[#allocation5 + $0x78] sm:$0xff]
    %v83 = vld [vmem:[%s2] sm:$0x1]
    %v85 = vperm.slane %v83, 0
    %87 = vmatpush.msra.mxu0 %v82
    %88 = vmatpush.msra.mxu0 %v81
    %89 = vmatpush.msra.mxu0 %v80
    %90 = vmatpush.msra.mxu0 %v79
    %91 = vmatpush.msra.mxu0 %v78
    %92 = vmatpush.msra.mxu0 %v77
    %93 = vmatpush.msra.mxu0 %v76
    %94 = vmatpush.msra.mxu0 %v75
    %95 = vmatpush.msra.mxu0 %v74
    %96 = vmatpush.msra.mxu0 %v73
    %97 = vmatpush.msra.mxu0 %v72
    %98 = vmatpush.msra.mxu0 %v71
    %99 = vmatpush.msra.mxu0 %v70
    %100 = vmatpush.msra.mxu0 %v69
    %101 = vmatpush.msra.mxu0 %v68
    %102 = vmatpush.msra.mxu0 %v67
    %103 = vmatmul.f32.gmra.mxu0 %v66
    %v104 = vpop.f32.mrf.mxu0
    %v105 = vadd.f32 %v85, %v104
    %106 = vdwg.mxu0
    %v107 = vsub.f32 0.0, %v105
    %v108 = vmul.f32 %v107, 1.442695
    %v109 = vpow.pop %v108
    %v110 = vadd.f32 %v109, 1.0
    %v111 = vrcp.pop %v110
    %v112 = vld [vmem:[#allocation7] sm:$0xff]
    %v113 = vld [vmem:[#allocation7 + $0x8] sm:$0xff]
    %v114 = vld [vmem:[#allocation7 + $0x10] sm:$0xff]
    %v115 = vld [vmem:[#allocation7 + $0x18] sm:$0xff]
    %v116 = vld [vmem:[#allocation7 + $0x20] sm:$0xff]
    %v117 = vld [vmem:[#allocation7 + $0x28] sm:$0xff]
    %v118 = vld [vmem:[#allocation7 + $0x30] sm:$0xff]
    %v119 = vld [vmem:[#allocation7 + $0x38] sm:$0xff]
    %v120 = vld [vmem:[#allocation7 + $0x40] sm:$0xff]
    %v121 = vld [vmem:[#allocation7 + $0x48] sm:$0xff]
    %v122 = vld [vmem:[#allocation7 + $0x50] sm:$0xff]
    %v123 = vld [vmem:[#allocation7 + $0x58] sm:$0xff]
    %v124 = vld [vmem:[#allocation7 + $0x60] sm:$0xff]
    %v125 = vld [vmem:[#allocation7 + $0x68] sm:$0xff]
    %v126 = vld [vmem:[#allocation7 + $0x70] sm:$0xff]
    %v127 = vld [vmem:[#allocation7 + $0x78] sm:$0xff]
    %v128 = vld [vmem:[%s4] sm:$0x1]
    %v130 = vperm.slane %v128, 0
    %132 = vmatpush.msra.mxu0 %v127
    %133 = vmatpush.msra.mxu0 %v126
    %134 = vmatpush.msra.mxu0 %v125
    %135 = vmatpush.msra.mxu0 %v124
    %136 = vmatpush.msra.mxu0 %v123
    %137 = vmatpush.msra.mxu0 %v122
    %138 = vmatpush.msra.mxu0 %v121
    %139 = vmatpush.msra.mxu0 %v120
    %140 = vmatpush.msra.mxu0 %v119
    %141 = vmatpush.msra.mxu0 %v118
    %142 = vmatpush.msra.mxu0 %v117
    %143 = vmatpush.msra.mxu0 %v116
    %144 = vmatpush.msra.mxu0 %v115
    %145 = vmatpush.msra.mxu0 %v114
    %146 = vmatpush.msra.mxu0 %v113
    %147 = vmatpush.msra.mxu0 %v112
    %148 = vmatmul.f32.gmra.mxu0 %v111
    %v149 = vpop.f32.mrf.mxu0
    %v150 = vadd.f32 %v130, %v149
    %151 = vdwg.mxu0
    %152 = vst [vmem:[#allocation8] sm:$0xff] %v150
    // Predicated region
    $region34: #{tpu_custom_call.1} parent=1 // pred_check
      _
    $region35: #{tpu_custom_call.1} parent=1 // pred_check_branch
      %154 = sbr.rel (0) target = $region37
    $region36: #{tpu_custom_call.1} parent=1 // pred_region
      %156 = vsyncadd [#allocation4], 0
      %s158 = sshll.u32 [#allocation8], 4
      %s159 = int_to_ptr.vmem [resolvable:$true] %s158
      %s160 = sshll.u32 %s5, 4
      %s161 = int_to_ptr.hbm [resolvable:$true] %s160
      %163 = dma.vmem_to_hbm [thread:$0]  %s159, 128, %s161, [#allocation4]
    $region37: #{tpu_custom_call.1} parent=1 // pred_fallthru
      _
    // Predicated region
    $region38: #{tpu_custom_call.1} parent=1 // pred_check
      _
    $region39: #{tpu_custom_call.1} parent=1 // pred_check_branch
      %165 = sbr.rel (0) target = $region41
    $region40: #{tpu_custom_call.1} parent=1 // pred_region
      %167 = dma.done [#allocation4], 128
    $region41: #{tpu_custom_call.1} parent=1 // pred_fallthru
      _
    %168 = vsyncpa [#allocation3], 1
    %169 = vsyncpa [#allocation6], 1
    %170 = vsyncpa [#allocation4], 1

</llo_original>
